<compile_context>
chip_gen: v7x
topology: tpu7x:2x2x1
jax: 0.10.0
libtpu: 0.0.40
codegen_flags: <defaults>
</compile_context>

<pallas_src>
import jax
import jax.numpy as jnp
import numpy as np
from jax.experimental import pallas as pl
from jax.experimental.pallas import tpu as pltpu

# ----------------------------- model sizes ---------------------------------
STATE_SIZE = 24        # per-agent state dim (e.g. Tennis env)
ACTION_SIZE = 2        # per-agent action dim
FC1_UNITS = 400        # module default
FC2_UNITS = 300        # module default
BATCH = 16


def _round_up(x, m):
    return ((x + m - 1) // m) * m


# ------------------------------- kernel ------------------------------------
def actor_kernel(s_ref, w1_ref, b1_ref, w2_ref, b2_ref, w3_ref, b3_ref, o_ref):
    """Whole 3-layer MLP forward for one batch block, all in VMEM.

    Weights / state are bf16 (MXU native), accumulation and the bias/ReLU/tanh
    epilogue are f32 (keeps accuracy and avoids bf16 VPU/EUP dependence on v5e).
    """
    # fc1 + relu
    x = jnp.maximum(
        jnp.dot(s_ref[...], w1_ref[...], preferred_element_type=jnp.float32)
        + b1_ref[...], 0.0)                              # [bm, F1p] f32
    # fc2 + relu
    x = jnp.maximum(
        jnp.dot(x.astype(jnp.bfloat16), w2_ref[...],
                preferred_element_type=jnp.float32)
        + b2_ref[...], 0.0)                              # [bm, F2p] f32
    # fc3 + tanh (EUP), lane-dense 128-wide output (padded action cols = tanh(0)=0)
    o_ref[...] = jnp.tanh(
        jnp.dot(x.astype(jnp.bfloat16), w3_ref[...],
                preferred_element_type=jnp.float32)
        + b3_ref[...])                                   # [bm, Ap] f32


# ------------------- one-time parameter layout preparation ------------------
def prepare_params(params):
    """Hoisted out of the forward pass.

    PyTorch (out, in) -> (in, out) transpose, zero-pad every feature axis up to
    a multiple of 128 lanes, weights to bf16, biases kept f32 as (1, N) rows.
    Zero padding keeps the math identical (relu(0)=0, tanh(0)=0).
    """
    w1, b1 = params["w1"], params["b1"]    # (F1, S), (F1,)
    w2, b2 = params["w2"], params["b2"]    # (F2, F1), (F2,)
    w3, b3 = params["w3"], params["b3"]    # (A,  F2), (A,)
    f1, ssz = w1.shape
    f2 = w2.shape[0]
    asz = w3.shape[0]
    f1p, f2p, ap = _round_up(f1, 128), _round_up(f2, 128), _round_up(asz, 128)

    def padT(w, rows, cols):   # transpose to (in, out) then zero-pad
        wt = jnp.asarray(w, jnp.float32).T
        return jnp.pad(wt, ((0, rows - wt.shape[0]), (0, cols - wt.shape[1])))

    def padb(b, cols):
        bb = jnp.asarray(b, jnp.float32).reshape(1, -1)
        return jnp.pad(bb, ((0, 0), (0, cols - bb.shape[1])))

    return {
        "w1t": padT(w1, ssz, f1p).astype(jnp.bfloat16),   # [S,   F1p]
        "b1":  padb(b1, f1p),                             # [1,   F1p] f32
        "w2t": padT(w2, f1p, f2p).astype(jnp.bfloat16),   # [F1p, F2p]
        "b2":  padb(b2, f2p),                             # [1,   F2p] f32
        "w3t": padT(w3, f2p, ap).astype(jnp.bfloat16),    # [F2p, Ap ]
        "b3":  padb(b3, ap),                              # [1,   Ap ] f32
    }


# ------------------------------ wrapper -------------------------------------
def actor_forward(state, prep, *, action_size):
    B, ssz = state.shape
    f1p = prep["w1t"].shape[1]
    f2p = prep["w2t"].shape[1]
    ap = prep["w3t"].shape[1]

    # Sublane-align the batch only (usually a no-op).  Batch tile up to 512
    # rows: weights are grid-invariant, so only state/activations scale with
    # bm (well under VMEM on every generation).  Partial final blocks are
    # masked by Pallas, so no full-tile padding is needed.
    Bp = _round_up(B, 8)
    bm = min(512, Bp)

    s = state.astype(jnp.bfloat16)
    if Bp != B:
        s = jnp.pad(s, ((0, Bp - B), (0, 0)))

    grid = (pl.cdiv(Bp, bm),)

    def full_spec(shape):
        return pl.BlockSpec(shape, lambda i: (0, 0))

    # Advisory cost: tiny-FLOP, DMA-light custom call -> let XLA overlap it.
    cost = pl.CostEstimate(
        flops=2 * Bp * (ssz * f1p + f1p * f2p + f2p * ap),
        transcendentals=Bp * ap,
        bytes_accessed=(prep["w1t"].size + prep["w2t"].size + prep["w3t"].size) * 2
        + (prep["b1"].size + prep["b2"].size + prep["b3"].size) * 4
        + s.size * 2 + Bp * ap * 4,
    )

    out = pl.pallas_call(
        actor_kernel,
        out_shape=jax.ShapeDtypeStruct((Bp, ap), jnp.float32),
        grid=grid,
        in_specs=[
            pl.BlockSpec((bm, ssz), lambda i: (i, 0)),   # state: tiled over batch
            full_spec((ssz, f1p)), full_spec((1, f1p)),
            full_spec((f1p, f2p)), full_spec((1, f2p)),
            full_spec((f2p, ap)), full_spec((1, ap)),
        ],
        out_specs=pl.BlockSpec((bm, ap), lambda i: (i, 0)),
        compiler_params=pltpu.CompilerParams(
            dimension_semantics=("parallel",)),
        cost_estimate=cost,
    )(s, prep["w1t"], prep["b1"], prep["w2t"], prep["b2"],
      prep["w3t"], prep["b3"])

    return out[:B, :action_size]


# ----------------------- deterministic parameter init -----------------------
def init_params(key, ssz=STATE_SIZE, asz=ACTION_SIZE,
                f1=FC1_UNITS, f2=FC2_UNITS):
    ks = jax.random.split(key, 6)

    def unif(k, shape, lim):
        return jax.random.uniform(k, shape, jnp.float32, -lim, lim)

    # Mimic reset_parameters(): hidden_init uses weight.size()[0] == out dim.
    # Biases keep PyTorch's default Linear init: U(-1/sqrt(in), 1/sqrt(in)).
    return {
        "w1": unif(ks[0], (f1, ssz), 1.0 / np.sqrt(f1)),
        "b1": unif(ks[1], (f1,), 1.0 / np.sqrt(ssz)),
        "w2": unif(ks[2], (f2, f1), 1.0 / np.sqrt(f2)),
        "b2": unif(ks[3], (f2,), 1.0 / np.sqrt(f1)),
        "w3": unif(ks[4], (asz, f2), 0.003),
        "b3": unif(ks[5], (asz,), 1.0 / np.sqrt(f2)),
    }


# ---------------------------- pure-JAX reference ----------------------------
def actor_ref(state, p):
    hp = jax.lax.Precision.HIGHEST
    x = jax.nn.relu(jnp.dot(state, p["w1"].T, precision=hp) + p["b1"])
    x = jax.nn.relu(jnp.dot(x, p["w2"].T, precision=hp) + p["b2"])
    return jnp.tanh(jnp.dot(x, p["w3"].T, precision=hp) + p["b3"])


# --------------------------------- main --------------------------------------
if __name__ == "__main__":
    key = jax.random.PRNGKey(0)
    k_s, k_p = jax.random.split(key)

    state = jax.random.normal(k_s, (BATCH, STATE_SIZE), jnp.float32)
    params = init_params(k_p)
    prep = prepare_params(params)          # one-time layout prep (hoisted)

    fwd = jax.jit(actor_forward, static_argnames=("action_size",))
    out = jax.block_until_ready(fwd(state, prep, action_size=ACTION_SIZE))

    ref = actor_ref(state, params)
    assert out.shape == (BATCH, ACTION_SIZE)
    # Tolerance re-baselined for bf16 weights/activations vs f32 HIGHEST ref.
    np.testing.assert_allclose(np.asarray(out), np.asarray(ref),
                               rtol=2e-2, atol=1e-2)
    print("KERNEL_OK")
</pallas_src>

<mosaic_0001>
module attributes {stable_mosaic.version = 11 : i64} {
  func.func @actor_kernel(%arg0: i32, %arg1: memref<16x24xbf16, #tpu.memory_space<vmem>>, %arg2: memref<24x512xbf16, #tpu.memory_space<vmem>>, %arg3: memref<1x512xf32, #tpu.memory_space<vmem>>, %arg4: memref<512x384xbf16, #tpu.memory_space<vmem>>, %arg5: memref<1x384xf32, #tpu.memory_space<vmem>>, %arg6: memref<384x128xbf16, #tpu.memory_space<vmem>>, %arg7: memref<1x128xf32, #tpu.memory_space<vmem>>, %arg8: memref<16x128xf32, #tpu.memory_space<vmem>>) attributes {dimension_semantics = [#tpu.dimension_semantics<parallel>], iteration_bounds = array<i64: 1>, scalar_prefetch = 0 : i64, scratch_operands = 0 : i64, tpu.core_type = #tpu.core_type<tc>, window_params = [{transform_indices = @transform_0, window_bounds = array<i64: 16, 24>}, {pipeline_mode = #tpu.pipeline_mode<synchronous>, transform_indices = @transform_1, window_bounds = array<i64: 24, 512>}, {pipeline_mode = #tpu.pipeline_mode<synchronous>, transform_indices = @transform_2, window_bounds = array<i64: 1, 512>}, {pipeline_mode = #tpu.pipeline_mode<synchronous>, transform_indices = @transform_3, window_bounds = array<i64: 512, 384>}, {pipeline_mode = #tpu.pipeline_mode<synchronous>, transform_indices = @transform_4, window_bounds = array<i64: 1, 384>}, {pipeline_mode = #tpu.pipeline_mode<synchronous>, transform_indices = @transform_5, window_bounds = array<i64: 384, 128>}, {pipeline_mode = #tpu.pipeline_mode<synchronous>, transform_indices = @transform_6, window_bounds = array<i64: 1, 128>}, {transform_indices = @transform_7, window_bounds = array<i64: 16, 128>}]} {
    %c0 = arith.constant 0 : index
    %c0_0 = arith.constant 0 : index
    %0 = vector.load %arg1[%c0, %c0_0] : memref<16x24xbf16, #tpu.memory_space<vmem>>, vector<16x24xbf16>
    %c0_1 = arith.constant 0 : index
    %c0_2 = arith.constant 0 : index
    %1 = vector.load %arg2[%c0_1, %c0_2] : memref<24x512xbf16, #tpu.memory_space<vmem>>, vector<24x512xbf16>
    %cst = arith.constant dense<0.000000e+00> : vector<16x512xf32>
    %2 = tpu.matmul %0, %1, %cst {dimension_numbers = #tpu.dot_dimension_numbers<[1], [0], [0], [1], [0, 0, 1, 1], [], []>} : vector<16x24xbf16>, vector<24x512xbf16>, vector<16x512xf32> -> vector<16x512xf32>
    %c0_3 = arith.constant 0 : index
    %c0_4 = arith.constant 0 : index
    %3 = vector.load %arg3[%c0_3, %c0_4] : memref<1x512xf32, #tpu.memory_space<vmem>>, vector<1x512xf32>
    %4 = vector.broadcast %3 : vector<1x512xf32> to vector<16x512xf32>
    %5 = arith.addf %2, %4 : vector<16x512xf32>
    %cst_5 = arith.constant 0.000000e+00 : f32
    %6 = vector.broadcast %cst_5 : f32 to vector<16x512xf32>
    %7 = arith.maximumf %5, %6 : vector<16x512xf32>
    %8 = arith.truncf %7 : vector<16x512xf32> to vector<16x512xbf16>
    %c0_6 = arith.constant 0 : index
    %c0_7 = arith.constant 0 : index
    %9 = vector.load %arg4[%c0_6, %c0_7] : memref<512x384xbf16, #tpu.memory_space<vmem>>, vector<512x384xbf16>
    %cst_8 = arith.constant dense<0.000000e+00> : vector<16x384xf32>
    %10 = tpu.matmul %8, %9, %cst_8 {dimension_numbers = #tpu.dot_dimension_numbers<[1], [0], [0], [1], [0, 0, 1, 1], [], []>} : vector<16x512xbf16>, vector<512x384xbf16>, vector<16x384xf32> -> vector<16x384xf32>
    %c0_9 = arith.constant 0 : index
    %c0_10 = arith.constant 0 : index
    %11 = vector.load %arg5[%c0_9, %c0_10] : memref<1x384xf32, #tpu.memory_space<vmem>>, vector<1x384xf32>
    %12 = vector.broadcast %11 : vector<1x384xf32> to vector<16x384xf32>
    %13 = arith.addf %10, %12 : vector<16x384xf32>
    %cst_11 = arith.constant 0.000000e+00 : f32
    %14 = vector.broadcast %cst_11 : f32 to vector<16x384xf32>
    %15 = arith.maximumf %13, %14 : vector<16x384xf32>
    %16 = arith.truncf %15 : vector<16x384xf32> to vector<16x384xbf16>
    %c0_12 = arith.constant 0 : index
    %c0_13 = arith.constant 0 : index
    %17 = vector.load %arg6[%c0_12, %c0_13] : memref<384x128xbf16, #tpu.memory_space<vmem>>, vector<384x128xbf16>
    %cst_14 = arith.constant dense<0.000000e+00> : vector<16x128xf32>
    %18 = tpu.matmul %16, %17, %cst_14 {dimension_numbers = #tpu.dot_dimension_numbers<[1], [0], [0], [1], [0, 0, 1, 1], [], []>} : vector<16x384xbf16>, vector<384x128xbf16>, vector<16x128xf32> -> vector<16x128xf32>
    %c0_15 = arith.constant 0 : index
    %c0_16 = arith.constant 0 : index
    %19 = vector.load %arg7[%c0_15, %c0_16] : memref<1x128xf32, #tpu.memory_space<vmem>>, vector<1x128xf32>
    %20 = vector.broadcast %19 : vector<1x128xf32> to vector<16x128xf32>
    %21 = arith.addf %18, %20 : vector<16x128xf32>
    %22 = math.tanh %21 : vector<16x128xf32>
    %c0_17 = arith.constant 0 : index
    %c0_18 = arith.constant 0 : index
    %23 = vector.load %arg8[%c0_17, %c0_18] : memref<16x128xf32, #tpu.memory_space<vmem>>, vector<16x128xf32>
    tpu.vector_store %arg8[%c0_17, %c0_18], %22 {strides = array<i32>} : memref<16x128xf32, #tpu.memory_space<vmem>>, vector<16x128xf32>,
    return
  }
  func.func @transform_0(%arg0: i32) -> (i32, i32) {
    %c0_i32 = arith.constant 0 : i32
    %c0_i32_0 = arith.constant 0 : i32
    return %arg0, %c0_i32 : i32, i32
  }
  func.func @transform_1(%arg0: i32) -> (i32, i32) {
    %c0_i32 = arith.constant 0 : i32
    %c0_i32_0 = arith.constant 0 : i32
    %c0_i32_1 = arith.constant 0 : i32
    return %c0_i32, %c0_i32_0 : i32, i32
  }
  func.func @transform_2(%arg0: i32) -> (i32, i32) {
    %c0_i32 = arith.constant 0 : i32
    %c0_i32_0 = arith.constant 0 : i32
    %c0_i32_1 = arith.constant 0 : i32
    return %c0_i32, %c0_i32_0 : i32, i32
  }
  func.func @transform_3(%arg0: i32) -> (i32, i32) {
    %c0_i32 = arith.constant 0 : i32
    %c0_i32_0 = arith.constant 0 : i32
    %c0_i32_1 = arith.constant 0 : i32
    return %c0_i32, %c0_i32_0 : i32, i32
  }
  func.func @transform_4(%arg0: i32) -> (i32, i32) {
    %c0_i32 = arith.constant 0 : i32
    %c0_i32_0 = arith.constant 0 : i32
    %c0_i32_1 = arith.constant 0 : i32
    return %c0_i32, %c0_i32_0 : i32, i32
  }
  func.func @transform_5(%arg0: i32) -> (i32, i32) {
    %c0_i32 = arith.constant 0 : i32
    %c0_i32_0 = arith.constant 0 : i32
    %c0_i32_1 = arith.constant 0 : i32
    return %c0_i32, %c0_i32_0 : i32, i32
  }
  func.func @transform_6(%arg0: i32) -> (i32, i32) {
    %c0_i32 = arith.constant 0 : i32
    %c0_i32_0 = arith.constant 0 : i32
    %c0_i32_1 = arith.constant 0 : i32
    return %c0_i32, %c0_i32_0 : i32, i32
  }
  func.func @transform_7(%arg0: i32) -> (i32, i32) {
    %c0_i32 = arith.constant 0 : i32
    %c0_i32_0 = arith.constant 0 : i32
    return %arg0, %c0_i32 : i32, i32
  }
}

</mosaic_0001>

<llo_original>
// kernel: actor_forward.1
$region0: #{actor_forward.1}
  #allocation0 [shape = 'u32[]', space=smem, size = 0x4, offset = 0x4, fixed_abs, tag = 'smem constant byte address 0x4 - core index']
  #allocation1 [shape = 'u32[144,128]{1,0:T(1,128)}', space=vmem, size = 0x12000, scoped, tag = 'internal scratch']
  %s0 = inlined_call_operand.vmem [shape: bf16[16,24], index: 0, kind: input, shape index: {}]
  %s1 = inlined_call_operand.hbm [shape: bf16[24,512], index: 1, kind: input, shape index: {}]
  %s2 = inlined_call_operand.vmem [shape: f32[1,512], index: 2, kind: input, shape index: {}]
  %s3 = inlined_call_operand.hbm [shape: bf16[512,384], index: 3, kind: input, shape index: {}]
  %s4 = inlined_call_operand.vmem [shape: f32[1,384], index: 4, kind: input, shape index: {}]
  %s5 = inlined_call_operand.hbm [shape: bf16[384,128], index: 5, kind: input, shape index: {}]
  %s6 = inlined_call_operand.vmem [shape: f32[1,128], index: 6, kind: input, shape index: {}]
  %s7 = inlined_call_operand.vmem [shape: f32[16,128], index: 7, kind: output, shape index: {}]
  %s8 = sld [smem:[#allocation0]]
  $region50: #{actor_forward.1} parent=0
    _
  %s10 = ssub.s32 1, %s8
  %s11 = scalar_select 0, %s10, %s8
  $region1: #{actor_forward.1} parent=0
    #allocation2 [shape = 'u8[24576]{0}', space=vmem, size = 0x6000, scoped, tag = 'input window, operand 1, single buffered']
    #allocation3 [shape = 's32[1]{0}', space=sflag, size = 0x4, scoped, tag = 'scoped memory for actor_forward.1']
    #allocation4 [shape = 'u8[393216]{0}', space=vmem, size = 0x60000, scoped, tag = 'input window, operand 3, single buffered']
    #allocation5 [shape = 's32[1]{0}', space=sflag, size = 0x4, scoped, tag = 'scoped memory for actor_forward.1']
    #allocation6 [shape = 'u8[98304]{0}', space=vmem, size = 0x18000, scoped, tag = 'input window, operand 5, single buffered']
    %12 = vsyncpa [#allocation3], 0
    %13 = vsyncpa [#allocation5], 0
    // Predicated region
    $region2: #{actor_forward.1} parent=1 // pred_check
      _
    $region3: #{actor_forward.1} parent=1 // pred_check_branch
      %15 = sbr.rel (0) target = $region5
    $region4: #{actor_forward.1} parent=1 // pred_region
      _
    $region5: #{actor_forward.1} parent=1 // pred_fallthru
      _
    // Predicated region
    $region6: #{actor_forward.1} parent=1 // pred_check
      _
    $region7: #{actor_forward.1} parent=1 // pred_check_branch
      %17 = sbr.rel (0) target = $region9
    $region8: #{actor_forward.1} parent=1 // pred_region
      %s19 = ssub.s32 768, 768
      %20 = vsyncadd [#allocation3], %s19
      %s21 = sshll.u32 [#allocation2], 4
      %s22 = int_to_ptr.vmem [resolvable:$true] %s21
      %27 = dma.hbm_to_vmem [thread:$0]  %s1, 768, %s22, [#allocation3], 256, 256, 16
    $region9: #{actor_forward.1} parent=1 // pred_fallthru
      _
    // Predicated region
    $region10: #{actor_forward.1} parent=1 // pred_check
      _
    $region11: #{actor_forward.1} parent=1 // pred_check_branch
      %29 = sbr.rel (0) target = $region13
    $region12: #{actor_forward.1} parent=1 // pred_region
      _
    $region13: #{actor_forward.1} parent=1 // pred_fallthru
      _
    // Predicated region
    $region14: #{actor_forward.1} parent=1 // pred_check
      _
    $region15: #{actor_forward.1} parent=1 // pred_check_branch
      %31 = sbr.rel (0) target = $region17
    $region16: #{actor_forward.1} parent=1 // pred_region
      %s33 = ssub.s32 12288, 12288
      %34 = vsyncadd [#allocation5], %s33
      %s35 = sshll.u32 [#allocation4], 4
      %s36 = int_to_ptr.vmem [resolvable:$true] %s35
      %41 = dma.hbm_to_vmem [thread:$0]  %s3, 12288, %s36, [#allocation5], 192, 192, 12
    $region17: #{actor_forward.1} parent=1 // pred_fallthru
      _
    // Predicated region
    $region18: #{actor_forward.1} parent=1 // pred_check
      _
    $region19: #{actor_forward.1} parent=1 // pred_check_branch
      %43 = sbr.rel (0) target = $region21
    $region20: #{actor_forward.1} parent=1 // pred_region
      _
    $region21: #{actor_forward.1} parent=1 // pred_fallthru
      _
    // Predicated region
    $region22: #{actor_forward.1} parent=1 // pred_check
      _
    $region23: #{actor_forward.1} parent=1 // pred_check_branch
      %45 = sbr.rel (0) target = $region25
    $region24: #{actor_forward.1} parent=1 // pred_region
      %s47 = ssub.s32 3072, 3072
      %48 = vsyncadd [#allocation5], %s47
      %s49 = sshll.u32 [#allocation6], 4
      %s50 = int_to_ptr.vmem [resolvable:$true] %s49
      %55 = dma.hbm_to_vmem [thread:$0]  %s5, 3072, %s50, [#allocation5], 64, 64, 4
    $region25: #{actor_forward.1} parent=1 // pred_fallthru
      _
    // Predicated region
    $region26: #{actor_forward.1} parent=1 // pred_check
      _
    $region27: #{actor_forward.1} parent=1 // pred_check_branch
      %57 = sbr.rel (0) target = $region29
    $region28: #{actor_forward.1} parent=1 // pred_region
      _
    $region29: #{actor_forward.1} parent=1 // pred_fallthru
      _
    // Predicated region
    $region30: #{actor_forward.1} parent=1 // pred_check
      _
    $region31: #{actor_forward.1} parent=1 // pred_check_branch
      %59 = sbr.rel (0) target = $region33
    $region32: #{actor_forward.1} parent=1 // pred_region
      %60 = dma.done [#allocation3], 768
    $region33: #{actor_forward.1} parent=1 // pred_fallthru
      _
    // Predicated region
    $region34: #{actor_forward.1} parent=1 // pred_check
      _
    $region35: #{actor_forward.1} parent=1 // pred_check_branch
      %62 = sbr.rel (0) target = $region37
    $region36: #{actor_forward.1} parent=1 // pred_region
      %63 = dma.done [#allocation5], 12288
    $region37: #{actor_forward.1} parent=1 // pred_fallthru
      _
    // Predicated region
    $region38: #{actor_forward.1} parent=1 // pred_check
      _
    $region39: #{actor_forward.1} parent=1 // pred_check_branch
      %65 = sbr.rel (0) target = $region41
    $region40: #{actor_forward.1} parent=1 // pred_region
      %66 = dma.done [#allocation5], 3072
    $region41: #{actor_forward.1} parent=1 // pred_fallthru
      _
    %v68 = vld [vmem:[%s0] sm:$0xf]
    %v69 = vld [vmem:[%s0 + $0x4] sm:$0xf]
    %v70 = vld [vmem:[#allocation2] sm:$0xff]
    %v71 = vld [vmem:[#allocation2 + $0x8] sm:$0xff]
    %v72 = vld [vmem:[#allocation2 + $0x10] sm:$0xff]
    %v73 = vld [vmem:[#allocation2 + $0x18] sm:$0xff]
    %v74 = vld [vmem:[#allocation2 + $0x20] sm:$0xff]
    %v75 = vld [vmem:[#allocation2 + $0x28] sm:$0xff]
    %v76 = vld [vmem:[%s2] sm:$0xf]
    %v78 = vlaneseq
    %v79 = vshrl.u32 %v78, 7
    %v80 = vsub.s32 0, %v79
    %v81 = vrot.slane %v76, %v80
    %v82 = vlaneseq
    %v83 = vshrl.u32 %v82, 7
    %v84 = vsub.s32 1, %v83
    %v85 = vrot.slane %v76, %v84
    %v86 = vlaneseq
    %v87 = vshrl.u32 %v86, 7
    %v88 = vsub.s32 2, %v87
    %v89 = vrot.slane %v76, %v88
    %v90 = vlaneseq
    %v91 = vshrl.u32 %v90, 7
    %v92 = vsub.s32 3, %v91
    %v93 = vrot.slane %v76, %v92
    %v100 = vunpack.c.l.b16 %v68
    %v101 = vunpack.c.l.b16 %v69
    %v102 = vpack.c.b16 %v101, %v100
    %v109 = vunpack.c.l.b16 %v70
    %v110 = vunpack.c.h.b16 %v70
    %v111 = vunpack.c.l.b16 %v71
    %v112 = vunpack.c.h.b16 %v71
    %v113 = vunpack.c.l.b16 %v72
    %v114 = vunpack.c.h.b16 %v72
    %v115 = vunpack.c.l.b16 %v73
    %v116 = vunpack.c.h.b16 %v73
    %v117 = vunpack.c.l.b16 %v74
    %v118 = vunpack.c.h.b16 %v74
    %v119 = vunpack.c.l.b16 %v75
    %v120 = vunpack.c.h.b16 %v75
    %v121 = vpack.c.b16 %v113, %v109
    %v122 = vpack.c.b16 %v114, %v110
    %v123 = vpack.c.b16 %v115, %v111
    %v124 = vpack.c.b16 %v116, %v112
    %v125 = vpack.c.b16 %v117, %v117
    %v126 = vpack.c.b16 %v118, %v118
    %v127 = vpack.c.b16 %v119, %v119
    %v128 = vpack.c.b16 %v120, %v120
    %vm133 = vcmask 195584
    %v135 = vsel %vm133, %v102, 0
    %vm137 = vcmask 1043456
    %v139 = vsel %vm137, %v125, 0
    %v142 = vsel %vm137, %v126, 0
    %v145 = vsel %vm137, %v127, 0
    %v148 = vsel %vm137, %v128, 0
    %150 = vmatprep.subr.bf16.mxu0 %v122
    %151 = vmatpush1.bf16.msra.mxu0 %v121
    %152 = vmatprep.subr.bf16.mxu0 %v142
    %153 = vmatpush1.bf16.msra.mxu0 %v139
    %154 = vmatprep.subr.bf16.mxu0 0
    %155 = vmatpush1.bf16.msra.mxu0 0
    %156 = vmatprep.subr.bf16.mxu0 0
    %157 = vmatpush1.bf16.msra.mxu0 0
    %158 = vmatprep.subr.bf16.mxu0 0
    %159 = vmatpush1.bf16.msra.mxu0 0
    %160 = vmatprep.subr.bf16.mxu0 0
    %161 = vmatpush1.bf16.msra.mxu0 0
    %162 = vmatprep.subr.bf16.mxu0 0
    %163 = vmatpush1.bf16.msra.mxu0 0
    %164 = vmatprep.subr.bf16.mxu0 0
    %165 = vmatpush1.bf16.msra.mxu0 0
    %166 = vmatprep.subr.bf16.mxu0 0
    %167 = vmatpush1.bf16.msra.mxu0 0
    %168 = vmatprep.subr.bf16.mxu0 0
    %169 = vmatpush1.bf16.msra.mxu0 0
    %170 = vmatprep.subr.bf16.mxu0 0
    %171 = vmatpush1.bf16.msra.mxu0 0
    %172 = vmatprep.subr.bf16.mxu0 0
    %173 = vmatpush1.bf16.msra.mxu0 0
    %174 = vmatprep.subr.bf16.mxu0 0
    %175 = vmatpush1.bf16.msra.mxu0 0
    %176 = vmatprep.subr.bf16.mxu0 0
    %177 = vmatpush1.bf16.msra.mxu0 0
    %178 = vmatprep.subr.bf16.mxu0 0
    %179 = vmatpush1.bf16.msra.mxu0 0
    %180 = vmatprep.subr.bf16.mxu0 0
    %181 = vmatpush1.bf16.msra.mxu0 0
    %182 = vmatprep.mubr.bf16.mxu0 0
    %183 = vmatmul.mubr.bf16.gmra.mrb[0].mxu0 %v135
    %v184 = vpop.f32.mrb[0].mxu0
    %v185 = vadd.f32 %v81, %v184
    %v186 = vpop.f32.mrb[0].mxu0
    %v187 = vadd.f32 %v85, %v186
    %v188 = vpop.f32.mrb[0].mxu0
    %v189 = vadd.f32 %v81, %v188
    %v190 = vpop.f32.mrb[0].mxu0
    %v191 = vadd.f32 %v85, %v190
    %192 = vdwg.mxu0
    %193 = vmatprep.subr.bf16.mxu0 %v124
    %194 = vmatpush1.bf16.msra.mxu0 %v123
    %195 = vmatprep.subr.bf16.mxu0 %v148
    %196 = vmatpush1.bf16.msra.mxu0 %v145
    %197 = vmatprep.subr.bf16.mxu0 0
    %198 = vmatpush1.bf16.msra.mxu0 0
    %199 = vmatprep.subr.bf16.mxu0 0
    %200 = vmatpush1.bf16.msra.mxu0 0
    %201 = vmatprep.subr.bf16.mxu0 0
    %202 = vmatpush1.bf16.msra.mxu0 0
    %203 = vmatprep.subr.bf16.mxu0 0
    %204 = vmatpush1.bf16.msra.mxu0 0
    %205 = vmatprep.subr.bf16.mxu0 0
    %206 = vmatpush1.bf16.msra.mxu0 0
    %207 = vmatprep.subr.bf16.mxu0 0
    %208 = vmatpush1.bf16.msra.mxu0 0
    %209 = vmatprep.subr.bf16.mxu0 0
    %210 = vmatpush1.bf16.msra.mxu0 0
    %211 = vmatprep.subr.bf16.mxu0 0
    %212 = vmatpush1.bf16.msra.mxu0 0
    %213 = vmatprep.subr.bf16.mxu0 0
    %214 = vmatpush1.bf16.msra.mxu0 0
    %215 = vmatprep.subr.bf16.mxu0 0
    %216 = vmatpush1.bf16.msra.mxu0 0
    %217 = vmatprep.subr.bf16.mxu0 0
    %218 = vmatpush1.bf16.msra.mxu0 0
    %219 = vmatprep.subr.bf16.mxu0 0
    %220 = vmatpush1.bf16.msra.mxu0 0
    %221 = vmatprep.subr.bf16.mxu0 0
    %222 = vmatpush1.bf16.msra.mxu0 0
    %223 = vmatprep.subr.bf16.mxu0 0
    %224 = vmatpush1.bf16.msra.mxu0 0
    %225 = vmatprep.mubr.bf16.mxu0 0
    %226 = vmatmul.mubr.bf16.gmra.mrb[0].mxu0 %v135
    %v227 = vpop.f32.mrb[0].mxu0
    %v228 = vadd.f32 %v89, %v227
    %v229 = vpop.f32.mrb[0].mxu0
    %v230 = vadd.f32 %v93, %v229
    %v231 = vpop.f32.mrb[0].mxu0
    %v232 = vadd.f32 %v89, %v231
    %v233 = vpop.f32.mrb[0].mxu0
    %v234 = vadd.f32 %v93, %v233
    %235 = vdwg.mxu0
    %v236 = vmax.f32 %v185, 0.0
    %v237 = vmax.f32 %v187, 0.0
    %v238 = vmax.f32 %v228, 0.0
    %v239 = vmax.f32 %v230, 0.0
    %v240 = vmax.f32 %v189, 0.0
    %v241 = vmax.f32 %v191, 0.0
    %v242 = vmax.f32 %v232, 0.0
    %v243 = vmax.f32 %v234, 0.0
    %v244 = vpack.c.bf16 %v240, %v236
    %v245 = vpack.c.bf16 %v241, %v237
    %v246 = vpack.c.bf16 %v242, %v238
    %v247 = vpack.c.bf16 %v243, %v239
    %v248 = vld [vmem:[#allocation4] sm:$0xff]
    %v249 = vld [vmem:[#allocation4 + $0x8] sm:$0xf]
    %v250 = vld [vmem:[#allocation4 + $0xc] sm:$0xff]
    %v251 = vld [vmem:[#allocation4 + $0x14] sm:$0xf]
    %v252 = vld [vmem:[#allocation4 + $0x18] sm:$0xff]
    %v253 = vld [vmem:[#allocation4 + $0x20] sm:$0xf]
    %v254 = vld [vmem:[#allocation4 + $0x24] sm:$0xff]
    %v255 = vld [vmem:[#allocation4 + $0x2c] sm:$0xf]
    %v256 = vld [vmem:[#allocation4 + $0x30] sm:$0xff]
    %v257 = vld [vmem:[#allocation4 + $0x38] sm:$0xf]
    %v258 = vld [vmem:[#allocation4 + $0x3c] sm:$0xff]
    %v259 = vld [vmem:[#allocation4 + $0x44] sm:$0xf]
    %v260 = vld [vmem:[#allocation4 + $0x48] sm:$0xff]
    %v261 = vld [vmem:[#allocation4 + $0x50] sm:$0xf]
    %v262 = vld [vmem:[#allocation4 + $0x54] sm:$0xff]
    %v263 = vld [vmem:[#allocation4 + $0x5c] sm:$0xf]
    %v264 = vld [vmem:[#allocation4 + $0x60] sm:$0xff]
    %v265 = vld [vmem:[#allocation4 + $0x68] sm:$0xf]
    %v266 = vld [vmem:[#allocation4 + $0x6c] sm:$0xff]
    %v267 = vld [vmem:[#allocation4 + $0x74] sm:$0xf]
    %v268 = vld [vmem:[#allocation4 + $0x78] sm:$0xff]
    %v269 = vld [vmem:[#allocation4 + $0x80] sm:$0xf]
    %v270 = vld [vmem:[#allocation4 + $0x84] sm:$0xff]
    %v271 = vld [vmem:[#allocation4 + $0x8c] sm:$0xf]
    %v272 = vld [vmem:[#allocation4 + $0x90] sm:$0xff]
    %v273 = vld [vmem:[#allocation4 + $0x98] sm:$0xf]
    %v274 = vld [vmem:[#allocation4 + $0x9c] sm:$0xff]
    %v275 = vld [vmem:[#allocation4 + $0xa4] sm:$0xf]
    %v276 = vld [vmem:[#allocation4 + $0xa8] sm:$0xff]
    %v277 = vld [vmem:[#allocation4 + $0xb0] sm:$0xf]
    %v278 = vld [vmem:[#allocation4 + $0xb4] sm:$0xff]
    %v279 = vld [vmem:[#allocation4 + $0xbc] sm:$0xf]
    %v280 = vld [vmem:[#allocation4 + $0xc0] sm:$0xff]
    %v281 = vld [vmem:[#allocation4 + $0xc8] sm:$0xf]
    %v282 = vld [vmem:[#allocation4 + $0xcc] sm:$0xff]
    %v283 = vld [vmem:[#allocation4 + $0xd4] sm:$0xf]
    %v284 = vld [vmem:[#allocation4 + $0xd8] sm:$0xff]
    %v285 = vld [vmem:[#allocation4 + $0xe0] sm:$0xf]
    %v286 = vld [vmem:[#allocation4 + $0xe4] sm:$0xff]
    %v287 = vld [vmem:[#allocation4 + $0xec] sm:$0xf]
    %v288 = vld [vmem:[#allocation4 + $0xf0] sm:$0xff]
    %v289 = vld [vmem:[#allocation4 + $0xf8] sm:$0xf]
    %v290 = vld [vmem:[#allocation4 + $0xfc] sm:$0xff]
    %v291 = vld [vmem:[#allocation4 + $0x104] sm:$0xf]
    %v292 = vld [vmem:[#allocation4 + $0x108] sm:$0xff]
    %v293 = vld [vmem:[#allocation4 + $0x110] sm:$0xf]
    %v294 = vld [vmem:[#allocation4 + $0x114] sm:$0xff]
    %v295 = vld [vmem:[#allocation4 + $0x11c] sm:$0xf]
    %v296 = vld [vmem:[#allocation4 + $0x120] sm:$0xff]
    %v297 = vld [vmem:[#allocation4 + $0x128] sm:$0xf]
    %v298 = vld [vmem:[#allocation4 + $0x12c] sm:$0xff]
    %v299 = vld [vmem:[#allocation4 + $0x134] sm:$0xf]
    %v300 = vld [vmem:[#allocation4 + $0x138] sm:$0xff]
    %v301 = vld [vmem:[#allocation4 + $0x140] sm:$0xf]
    %v302 = vld [vmem:[#allocation4 + $0x144] sm:$0xff]
    %v303 = vld [vmem:[#allocation4 + $0x14c] sm:$0xf]
    %v304 = vld [vmem:[#allocation4 + $0x150] sm:$0xff]
    %v305 = vld [vmem:[#allocation4 + $0x158] sm:$0xf]
    %v306 = vld [vmem:[#allocation4 + $0x15c] sm:$0xff]
    %v307 = vld [vmem:[#allocation4 + $0x164] sm:$0xf]
    %v308 = vld [vmem:[#allocation4 + $0x168] sm:$0xff]
    %v309 = vld [vmem:[#allocation4 + $0x170] sm:$0xf]
    %v310 = vld [vmem:[#allocation4 + $0x174] sm:$0xff]
    %v311 = vld [vmem:[#allocation4 + $0x17c] sm:$0xf]
    %v312 = vld [vmem:[#allocation4 + $0x180] sm:$0xff]
    %v313 = vld [vmem:[#allocation4 + $0x188] sm:$0xf]
    %v314 = vld [vmem:[#allocation4 + $0x18c] sm:$0xff]
    %v315 = vld [vmem:[#allocation4 + $0x194] sm:$0xf]
    %v316 = vld [vmem:[#allocation4 + $0x198] sm:$0xff]
    %v317 = vld [vmem:[#allocation4 + $0x1a0] sm:$0xf]
    %v318 = vld [vmem:[#allocation4 + $0x1a4] sm:$0xff]
    %v319 = vld [vmem:[#allocation4 + $0x1ac] sm:$0xf]
    %v320 = vld [vmem:[#allocation4 + $0x1b0] sm:$0xff]
    %v321 = vld [vmem:[#allocation4 + $0x1b8] sm:$0xf]
    %v322 = vld [vmem:[#allocation4 + $0x1bc] sm:$0xff]
    %v323 = vld [vmem:[#allocation4 + $0x1c4] sm:$0xf]
    %v324 = vld [vmem:[#allocation4 + $0x1c8] sm:$0xff]
    %v325 = vld [vmem:[#allocation4 + $0x1d0] sm:$0xf]
    %v326 = vld [vmem:[#allocation4 + $0x1d4] sm:$0xff]
    %v327 = vld [vmem:[#allocation4 + $0x1dc] sm:$0xf]
    %v328 = vld [vmem:[#allocation4 + $0x1e0] sm:$0xff]
    %v329 = vld [vmem:[#allocation4 + $0x1e8] sm:$0xf]
    %v330 = vld [vmem:[#allocation4 + $0x1ec] sm:$0xff]
    %v331 = vld [vmem:[#allocation4 + $0x1f4] sm:$0xf]
    %v332 = vld [vmem:[#allocation4 + $0x1f8] sm:$0xff]
    %v333 = vld [vmem:[#allocation4 + $0x200] sm:$0xf]
    %v334 = vld [vmem:[#allocation4 + $0x204] sm:$0xff]
    %v335 = vld [vmem:[#allocation4 + $0x20c] sm:$0xf]
    %v336 = vld [vmem:[#allocation4 + $0x210] sm:$0xff]
    %v337 = vld [vmem:[#allocation4 + $0x218] sm:$0xf]
    %v338 = vld [vmem:[#allocation4 + $0x21c] sm:$0xff]
    %v339 = vld [vmem:[#allocation4 + $0x224] sm:$0xf]
    %v340 = vld [vmem:[#allocation4 + $0x228] sm:$0xff]
    %v341 = vld [vmem:[#allocation4 + $0x230] sm:$0xf]
    %v342 = vld [vmem:[#allocation4 + $0x234] sm:$0xff]
    %v343 = vld [vmem:[#allocation4 + $0x23c] sm:$0xf]
    %v344 = vld [vmem:[#allocation4 + $0x240] sm:$0xff]
    %v345 = vld [vmem:[#allocation4 + $0x248] sm:$0xf]
    %v346 = vld [vmem:[#allocation4 + $0x24c] sm:$0xff]
    %v347 = vld [vmem:[#allocation4 + $0x254] sm:$0xf]
    %v348 = vld [vmem:[#allocation4 + $0x258] sm:$0xff]
    %v349 = vld [vmem:[#allocation4 + $0x260] sm:$0xf]
    %v350 = vld [vmem:[#allocation4 + $0x264] sm:$0xff]
    %v351 = vld [vmem:[#allocation4 + $0x26c] sm:$0xf]
    %v352 = vld [vmem:[#allocation4 + $0x270] sm:$0xff]
    %v353 = vld [vmem:[#allocation4 + $0x278] sm:$0xf]
    %v354 = vld [vmem:[#allocation4 + $0x27c] sm:$0xff]
    %v355 = vld [vmem:[#allocation4 + $0x284] sm:$0xf]
    %v356 = vld [vmem:[#allocation4 + $0x288] sm:$0xff]
    %v357 = vld [vmem:[#allocation4 + $0x290] sm:$0xf]
    %v358 = vld [vmem:[#allocation4 + $0x294] sm:$0xff]
    %v359 = vld [vmem:[#allocation4 + $0x29c] sm:$0xf]
    %v360 = vld [vmem:[#allocation4 + $0x2a0] sm:$0xff]
    %v361 = vld [vmem:[#allocation4 + $0x2a8] sm:$0xf]
    %v362 = vld [vmem:[#allocation4 + $0x2ac] sm:$0xff]
    %v363 = vld [vmem:[#allocation4 + $0x2b4] sm:$0xf]
    %v364 = vld [vmem:[#allocation4 + $0x2b8] sm:$0xff]
    %v365 = vld [vmem:[#allocation4 + $0x2c0] sm:$0xf]
    %v366 = vld [vmem:[#allocation4 + $0x2c4] sm:$0xff]
    %v367 = vld [vmem:[#allocation4 + $0x2cc] sm:$0xf]
    %v368 = vld [vmem:[#allocation4 + $0x2d0] sm:$0xff]
    %v369 = vld [vmem:[#allocation4 + $0x2d8] sm:$0xf]
    %v370 = vld [vmem:[#allocation4 + $0x2dc] sm:$0xff]
    %v371 = vld [vmem:[#allocation4 + $0x2e4] sm:$0xf]
    %v372 = vld [vmem:[#allocation4 + $0x2e8] sm:$0xff]
    %v373 = vld [vmem:[#allocation4 + $0x2f0] sm:$0xf]
    %v374 = vld [vmem:[#allocation4 + $0x2f4] sm:$0xff]
    %v375 = vld [vmem:[#allocation4 + $0x2fc] sm:$0xf]
    %v376 = vld [vmem:[%s4] sm:$0x7]
    %v378 = vlaneseq
    %v379 = vshrl.u32 %v378, 7
    %v380 = vsub.s32 0, %v379
    %v381 = vrot.slane %v376, %v380
    %v382 = vlaneseq
    %v383 = vshrl.u32 %v382, 7
    %v384 = vsub.s32 1, %v383
    %v385 = vrot.slane %v376, %v384
    %v386 = vlaneseq
    %v387 = vshrl.u32 %v386, 7
    %v388 = vsub.s32 2, %v387
    %v389 = vrot.slane %v376, %v388
    %v521 = vunpack.c.l.b16 %v248
    %v522 = vunpack.c.h.b16 %v248
    %v523 = vunpack.c.l.b16 %v249
    %v524 = vunpack.c.l.b16 %v250
    %v525 = vunpack.c.h.b16 %v250
    %v526 = vunpack.c.l.b16 %v251
    %v527 = vunpack.c.l.b16 %v252
    %v528 = vunpack.c.h.b16 %v252
    %v529 = vunpack.c.l.b16 %v253
    %v530 = vunpack.c.l.b16 %v254
    %v531 = vunpack.c.h.b16 %v254
    %v532 = vunpack.c.l.b16 %v255
    %v533 = vunpack.c.l.b16 %v256
    %v534 = vunpack.c.h.b16 %v256
    %v535 = vunpack.c.l.b16 %v257
    %v536 = vunpack.c.l.b16 %v258
    %v537 = vunpack.c.h.b16 %v258
    %v538 = vunpack.c.l.b16 %v259
    %v539 = vunpack.c.l.b16 %v260
    %v540 = vunpack.c.h.b16 %v260
    %v541 = vunpack.c.l.b16 %v261
    %v542 = vunpack.c.l.b16 %v262
    %v543 = vunpack.c.h.b16 %v262
    %v544 = vunpack.c.l.b16 %v263
    %v545 = vunpack.c.l.b16 %v264
    %v546 = vunpack.c.h.b16 %v264
    %v547 = vunpack.c.l.b16 %v265
    %v548 = vunpack.c.l.b16 %v266
    %v549 = vunpack.c.h.b16 %v266
    %v550 = vunpack.c.l.b16 %v267
    %v551 = vunpack.c.l.b16 %v268
    %v552 = vunpack.c.h.b16 %v268
    %v553 = vunpack.c.l.b16 %v269
    %v554 = vunpack.c.l.b16 %v270
    %v555 = vunpack.c.h.b16 %v270
    %v556 = vunpack.c.l.b16 %v271
    %v557 = vunpack.c.l.b16 %v272
    %v558 = vunpack.c.h.b16 %v272
    %v559 = vunpack.c.l.b16 %v273
    %v560 = vunpack.c.l.b16 %v274
    %v561 = vunpack.c.h.b16 %v274
    %v562 = vunpack.c.l.b16 %v275
    %v563 = vunpack.c.l.b16 %v276
    %v564 = vunpack.c.h.b16 %v276
    %v565 = vunpack.c.l.b16 %v277
    %v566 = vunpack.c.l.b16 %v278
    %v567 = vunpack.c.h.b16 %v278
    %v568 = vunpack.c.l.b16 %v279
    %v569 = vunpack.c.l.b16 %v280
    %v570 = vunpack.c.h.b16 %v280
    %v571 = vunpack.c.l.b16 %v281
    %v572 = vunpack.c.l.b16 %v282
    %v573 = vunpack.c.h.b16 %v282
    %v574 = vunpack.c.l.b16 %v283
    %v575 = vunpack.c.l.b16 %v284
    %v576 = vunpack.c.h.b16 %v284
    %v577 = vunpack.c.l.b16 %v285
    %v578 = vunpack.c.l.b16 %v286
    %v579 = vunpack.c.h.b16 %v286
    %v580 = vunpack.c.l.b16 %v287
    %v581 = vunpack.c.l.b16 %v288
    %v582 = vunpack.c.h.b16 %v288
    %v583 = vunpack.c.l.b16 %v289
    %v584 = vunpack.c.l.b16 %v290
    %v585 = vunpack.c.h.b16 %v290
    %v586 = vunpack.c.l.b16 %v291
    %v587 = vunpack.c.l.b16 %v292
    %v588 = vunpack.c.h.b16 %v292
    %v589 = vunpack.c.l.b16 %v293
    %v590 = vunpack.c.l.b16 %v294
    %v591 = vunpack.c.h.b16 %v294
    %v592 = vunpack.c.l.b16 %v295
    %v593 = vunpack.c.l.b16 %v296
    %v594 = vunpack.c.h.b16 %v296
    %v595 = vunpack.c.l.b16 %v297
    %v596 = vunpack.c.l.b16 %v298
    %v597 = vunpack.c.h.b16 %v298
    %v598 = vunpack.c.l.b16 %v299
    %v599 = vunpack.c.l.b16 %v300
    %v600 = vunpack.c.h.b16 %v300
    %v601 = vunpack.c.l.b16 %v301
    %v602 = vunpack.c.l.b16 %v302
    %v603 = vunpack.c.h.b16 %v302
    %v604 = vunpack.c.l.b16 %v303
    %v605 = vunpack.c.l.b16 %v304
    %v606 = vunpack.c.h.b16 %v304
    %v607 = vunpack.c.l.b16 %v305
    %v608 = vunpack.c.l.b16 %v306
    %v609 = vunpack.c.h.b16 %v306
    %v610 = vunpack.c.l.b16 %v307
    %v611 = vunpack.c.l.b16 %v308
    %v612 = vunpack.c.h.b16 %v308
    %v613 = vunpack.c.l.b16 %v309
    %v614 = vunpack.c.l.b16 %v310
    %v615 = vunpack.c.h.b16 %v310
    %v616 = vunpack.c.l.b16 %v311
    %v617 = vunpack.c.l.b16 %v312
    %v618 = vunpack.c.h.b16 %v312
    %v619 = vunpack.c.l.b16 %v313
    %v620 = vunpack.c.l.b16 %v314
    %v621 = vunpack.c.h.b16 %v314
    %v622 = vunpack.c.l.b16 %v315
    %v623 = vunpack.c.l.b16 %v316
    %v624 = vunpack.c.h.b16 %v316
    %v625 = vunpack.c.l.b16 %v317
    %v626 = vunpack.c.l.b16 %v318
    %v627 = vunpack.c.h.b16 %v318
    %v628 = vunpack.c.l.b16 %v319
    %v629 = vunpack.c.l.b16 %v320
    %v630 = vunpack.c.h.b16 %v320
    %v631 = vunpack.c.l.b16 %v321
    %v632 = vunpack.c.l.b16 %v322
    %v633 = vunpack.c.h.b16 %v322
    %v634 = vunpack.c.l.b16 %v323
    %v635 = vunpack.c.l.b16 %v324
    %v636 = vunpack.c.h.b16 %v324
    %v637 = vunpack.c.l.b16 %v325
    %v638 = vunpack.c.l.b16 %v326
    %v639 = vunpack.c.h.b16 %v326
    %v640 = vunpack.c.l.b16 %v327
    %v641 = vunpack.c.l.b16 %v328
    %v642 = vunpack.c.h.b16 %v328
    %v643 = vunpack.c.l.b16 %v329
    %v644 = vunpack.c.l.b16 %v330
    %v645 = vunpack.c.h.b16 %v330
    %v646 = vunpack.c.l.b16 %v331
    %v647 = vunpack.c.l.b16 %v332
    %v648 = vunpack.c.h.b16 %v332
    %v649 = vunpack.c.l.b16 %v333
    %v650 = vunpack.c.l.b16 %v334
    %v651 = vunpack.c.h.b16 %v334
    %v652 = vunpack.c.l.b16 %v335
    %v653 = vunpack.c.l.b16 %v336
    %v654 = vunpack.c.h.b16 %v336
    %v655 = vunpack.c.l.b16 %v337
    %v656 = vunpack.c.l.b16 %v338
    %v657 = vunpack.c.h.b16 %v338
    %v658 = vunpack.c.l.b16 %v339
    %v659 = vunpack.c.l.b16 %v340
    %v660 = vunpack.c.h.b16 %v340
    %v661 = vunpack.c.l.b16 %v341
    %v662 = vunpack.c.l.b16 %v342
    %v663 = vunpack.c.h.b16 %v342
    %v664 = vunpack.c.l.b16 %v343
    %v665 = vunpack.c.l.b16 %v344
    %v666 = vunpack.c.h.b16 %v344
    %v667 = vunpack.c.l.b16 %v345
    %v668 = vunpack.c.l.b16 %v346
    %v669 = vunpack.c.h.b16 %v346
    %v670 = vunpack.c.l.b16 %v347
    %v671 = vunpack.c.l.b16 %v348
    %v672 = vunpack.c.h.b16 %v348
    %v673 = vunpack.c.l.b16 %v349
    %v674 = vunpack.c.l.b16 %v350
    %v675 = vunpack.c.h.b16 %v350
    %v676 = vunpack.c.l.b16 %v351
    %v677 = vunpack.c.l.b16 %v352
    %v678 = vunpack.c.h.b16 %v352
    %v679 = vunpack.c.l.b16 %v353
    %v680 = vunpack.c.l.b16 %v354
    %v681 = vunpack.c.h.b16 %v354
    %v682 = vunpack.c.l.b16 %v355
    %v683 = vunpack.c.l.b16 %v356
    %v684 = vunpack.c.h.b16 %v356
    %v685 = vunpack.c.l.b16 %v357
    %v686 = vunpack.c.l.b16 %v358
    %v687 = vunpack.c.h.b16 %v358
    %v688 = vunpack.c.l.b16 %v359
    %v689 = vunpack.c.l.b16 %v360
    %v690 = vunpack.c.h.b16 %v360
    %v691 = vunpack.c.l.b16 %v361
    %v692 = vunpack.c.l.b16 %v362
    %v693 = vunpack.c.h.b16 %v362
    %v694 = vunpack.c.l.b16 %v363
    %v695 = vunpack.c.l.b16 %v364
    %v696 = vunpack.c.h.b16 %v364
    %v697 = vunpack.c.l.b16 %v365
    %v698 = vunpack.c.l.b16 %v366
    %v699 = vunpack.c.h.b16 %v366
    %v700 = vunpack.c.l.b16 %v367
    %v701 = vunpack.c.l.b16 %v368
    %v702 = vunpack.c.h.b16 %v368
    %v703 = vunpack.c.l.b16 %v369
    %v704 = vunpack.c.l.b16 %v370
    %v705 = vunpack.c.h.b16 %v370
    %v706 = vunpack.c.l.b16 %v371
    %v707 = vunpack.c.l.b16 %v372
    %v708 = vunpack.c.h.b16 %v372
    %v709 = vunpack.c.l.b16 %v373
    %v710 = vunpack.c.l.b16 %v374
    %v711 = vunpack.c.h.b16 %v374
    %v712 = vunpack.c.l.b16 %v375
    %v713 = vpack.c.b16 %v524, %v521
    %v714 = vpack.c.b16 %v525, %v522
    %v715 = vpack.c.b16 %v526, %v523
    %v716 = vpack.c.b16 %v530, %v527
    %v717 = vpack.c.b16 %v531, %v528
    %v718 = vpack.c.b16 %v532, %v529
    %v719 = vpack.c.b16 %v536, %v533
    %v720 = vpack.c.b16 %v537, %v534
    %v721 = vpack.c.b16 %v538, %v535
    %v722 = vpack.c.b16 %v542, %v539
    %v723 = vpack.c.b16 %v543, %v540
    %v724 = vpack.c.b16 %v544, %v541
    %v725 = vpack.c.b16 %v548, %v545
    %v726 = vpack.c.b16 %v549, %v546
    %v727 = vpack.c.b16 %v550, %v547
    %v728 = vpack.c.b16 %v554, %v551
    %v729 = vpack.c.b16 %v555, %v552
    %v730 = vpack.c.b16 %v556, %v553
    %v731 = vpack.c.b16 %v560, %v557
    %v732 = vpack.c.b16 %v561, %v558
    %v733 = vpack.c.b16 %v562, %v559
    %v734 = vpack.c.b16 %v566, %v563
    %v735 = vpack.c.b16 %v567, %v564
    %v736 = vpack.c.b16 %v568, %v565
    %v737 = vpack.c.b16 %v572, %v569
    %v738 = vpack.c.b16 %v573, %v570
    %v739 = vpack.c.b16 %v574, %v571
    %v740 = vpack.c.b16 %v578, %v575
    %v741 = vpack.c.b16 %v579, %v576
    %v742 = vpack.c.b16 %v580, %v577
    %v743 = vpack.c.b16 %v584, %v581
    %v744 = vpack.c.b16 %v585, %v582
    %v745 = vpack.c.b16 %v586, %v583
    %v746 = vpack.c.b16 %v590, %v587
    %v747 = vpack.c.b16 %v591, %v588
    %v748 = vpack.c.b16 %v592, %v589
    %v749 = vpack.c.b16 %v596, %v593
    %v750 = vpack.c.b16 %v597, %v594
    %v751 = vpack.c.b16 %v598, %v595
    %v752 = vpack.c.b16 %v602, %v599
    %v753 = vpack.c.b16 %v603, %v600
    %v754 = vpack.c.b16 %v604, %v601
    %v755 = vpack.c.b16 %v608, %v605
    %v756 = vpack.c.b16 %v609, %v606
    %v757 = vpack.c.b16 %v610, %v607
    %v758 = vpack.c.b16 %v614, %v611
    %v759 = vpack.c.b16 %v615, %v612
    %v760 = vpack.c.b16 %v616, %v613
    %v761 = vpack.c.b16 %v620, %v617
    %v762 = vpack.c.b16 %v621, %v618
    %v763 = vpack.c.b16 %v622, %v619
    %v764 = vpack.c.b16 %v626, %v623
    %v765 = vpack.c.b16 %v627, %v624
    %v766 = vpack.c.b16 %v628, %v625
    %v767 = vpack.c.b16 %v632, %v629
    %v768 = vpack.c.b16 %v633, %v630
    %v769 = vpack.c.b16 %v634, %v631
    %v770 = vpack.c.b16 %v638, %v635
    %v771 = vpack.c.b16 %v639, %v636
    %v772 = vpack.c.b16 %v640, %v637
    %v773 = vpack.c.b16 %v644, %v641
    %v774 = vpack.c.b16 %v645, %v642
    %v775 = vpack.c.b16 %v646, %v643
    %v776 = vpack.c.b16 %v650, %v647
    %v777 = vpack.c.b16 %v651, %v648
    %v778 = vpack.c.b16 %v652, %v649
    %v779 = vpack.c.b16 %v656, %v653
    %v780 = vpack.c.b16 %v657, %v654
    %v781 = vpack.c.b16 %v658, %v655
    %v782 = vpack.c.b16 %v662, %v659
    %v783 = vpack.c.b16 %v663, %v660
    %v784 = vpack.c.b16 %v664, %v661
    %v785 = vpack.c.b16 %v668, %v665
    %v786 = vpack.c.b16 %v669, %v666
    %v787 = vpack.c.b16 %v670, %v667
    %v788 = vpack.c.b16 %v674, %v671
    %v789 = vpack.c.b16 %v675, %v672
    %v790 = vpack.c.b16 %v676, %v673
    %v791 = vpack.c.b16 %v680, %v677
    %v792 = vpack.c.b16 %v681, %v678
    %v793 = vpack.c.b16 %v682, %v679
    %v794 = vpack.c.b16 %v686, %v683
    %v795 = vpack.c.b16 %v687, %v684
    %v796 = vpack.c.b16 %v688, %v685
    %v797 = vpack.c.b16 %v692, %v689
    %v798 = vpack.c.b16 %v693, %v690
    %v799 = vpack.c.b16 %v694, %v691
    %v800 = vpack.c.b16 %v698, %v695
    %v801 = vpack.c.b16 %v699, %v696
    %v802 = vpack.c.b16 %v700, %v697
    %v803 = vpack.c.b16 %v704, %v701
    %v804 = vpack.c.b16 %v705, %v702
    %v805 = vpack.c.b16 %v706, %v703
    %v806 = vpack.c.b16 %v710, %v707
    %v807 = vpack.c.b16 %v711, %v708
    %v808 = vpack.c.b16 %v712, %v709
    %905 = vmatprep.subr.bf16.mxu0 %v714
    %906 = vmatpush1.bf16.msra.mxu0 %v713
    %907 = vmatprep.subr.bf16.mxu0 %v717
    %908 = vmatpush1.bf16.msra.mxu0 %v716
    %909 = vmatprep.subr.bf16.mxu0 %v720
    %910 = vmatpush1.bf16.msra.mxu0 %v719
    %911 = vmatprep.subr.bf16.mxu0 %v723
    %912 = vmatpush1.bf16.msra.mxu0 %v722
    %913 = vmatprep.subr.bf16.mxu0 %v726
    %914 = vmatpush1.bf16.msra.mxu0 %v725
    %915 = vmatprep.subr.bf16.mxu0 %v729
    %916 = vmatpush1.bf16.msra.mxu0 %v728
    %917 = vmatprep.subr.bf16.mxu0 %v732
    %918 = vmatpush1.bf16.msra.mxu0 %v731
    %919 = vmatprep.subr.bf16.mxu0 %v735
    %920 = vmatpush1.bf16.msra.mxu0 %v734
    %921 = vmatprep.subr.bf16.mxu0 %v738
    %922 = vmatpush1.bf16.msra.mxu0 %v737
    %923 = vmatprep.subr.bf16.mxu0 %v741
    %924 = vmatpush1.bf16.msra.mxu0 %v740
    %925 = vmatprep.subr.bf16.mxu0 %v744
    %926 = vmatpush1.bf16.msra.mxu0 %v743
    %927 = vmatprep.subr.bf16.mxu0 %v747
    %928 = vmatpush1.bf16.msra.mxu0 %v746
    %929 = vmatprep.subr.bf16.mxu0 %v750
    %930 = vmatpush1.bf16.msra.mxu0 %v749
    %931 = vmatprep.subr.bf16.mxu0 %v753
    %932 = vmatpush1.bf16.msra.mxu0 %v752
    %933 = vmatprep.subr.bf16.mxu0 %v756
    %934 = vmatpush1.bf16.msra.mxu0 %v755
    %935 = vmatprep.subr.bf16.mxu0 %v759
    %936 = vmatpush1.bf16.msra.mxu0 %v758
    %937 = vmatprep.mubr.bf16.mxu0 %v245
    %938 = vmatmul.mubr.bf16.gmra.mrb[0].mxu0 %v244
    %v939 = vpop.f32.mrb[0].mxu0
    %v940 = vadd.f32 %v381, %v939
    %v941 = vpop.f32.mrb[0].mxu0
    %v942 = vadd.f32 %v385, %v941
    %v943 = vpop.f32.mrb[0].mxu0
    %v944 = vadd.f32 %v381, %v943
    %v945 = vpop.f32.mrb[0].mxu0
    %v946 = vadd.f32 %v385, %v945
    %947 = vdwg.mxu0
    %948 = vmatprep.subr.bf16.mxu0 %v762
    %949 = vmatpush1.bf16.msra.mxu0 %v761
    %950 = vmatprep.subr.bf16.mxu0 %v765
    %951 = vmatpush1.bf16.msra.mxu0 %v764
    %952 = vmatprep.subr.bf16.mxu0 %v768
    %953 = vmatpush1.bf16.msra.mxu0 %v767
    %954 = vmatprep.subr.bf16.mxu0 %v771
    %955 = vmatpush1.bf16.msra.mxu0 %v770
    %956 = vmatprep.subr.bf16.mxu0 %v774
    %957 = vmatpush1.bf16.msra.mxu0 %v773
    %958 = vmatprep.subr.bf16.mxu0 %v777
    %959 = vmatpush1.bf16.msra.mxu0 %v776
    %960 = vmatprep.subr.bf16.mxu0 %v780
    %961 = vmatpush1.bf16.msra.mxu0 %v779
    %962 = vmatprep.subr.bf16.mxu0 %v783
    %963 = vmatpush1.bf16.msra.mxu0 %v782
    %964 = vmatprep.subr.bf16.mxu0 %v786
    %965 = vmatpush1.bf16.msra.mxu0 %v785
    %966 = vmatprep.subr.bf16.mxu0 %v789
    %967 = vmatpush1.bf16.msra.mxu0 %v788
    %968 = vmatprep.subr.bf16.mxu0 %v792
    %969 = vmatpush1.bf16.msra.mxu0 %v791
    %970 = vmatprep.subr.bf16.mxu0 %v795
    %971 = vmatpush1.bf16.msra.mxu0 %v794
    %972 = vmatprep.subr.bf16.mxu0 %v798
    %973 = vmatpush1.bf16.msra.mxu0 %v797
    %974 = vmatprep.subr.bf16.mxu0 %v801
    %975 = vmatpush1.bf16.msra.mxu0 %v800
    %976 = vmatprep.subr.bf16.mxu0 %v804
    %977 = vmatpush1.bf16.msra.mxu0 %v803
    %978 = vmatprep.subr.bf16.mxu0 %v807
    %979 = vmatpush1.bf16.msra.mxu0 %v806
    %980 = vmatprep.mubr.bf16.mxu0 %v247
    %981 = vmatmul.mubr.bf16.gmra.mrb[0].mxu0 %v246
    %v982 = vpop.f32.mrb[0].mxu0
    %v983 = vadd.f32 %v940, %v982
    %v984 = vpop.f32.mrb[0].mxu0
    %v985 = vadd.f32 %v942, %v984
    %v986 = vpop.f32.mrb[0].mxu0
    %v987 = vadd.f32 %v944, %v986
    %v988 = vpop.f32.mrb[0].mxu0
    %v989 = vadd.f32 %v946, %v988
    %990 = vdwg.mxu0
    %991 = vmatprep.subr.bf16.mxu0 0
    %992 = vmatpush1.bf16.msra.mxu0 %v715
    %993 = vmatprep.subr.bf16.mxu0 0
    %994 = vmatpush1.bf16.msra.mxu0 %v718
    %995 = vmatprep.subr.bf16.mxu0 0
    %996 = vmatpush1.bf16.msra.mxu0 %v721
    %997 = vmatprep.subr.bf16.mxu0 0
    %998 = vmatpush1.bf16.msra.mxu0 %v724
    %999 = vmatprep.subr.bf16.mxu0 0
    %1000 = vmatpush1.bf16.msra.mxu0 %v727
    %1001 = vmatprep.subr.bf16.mxu0 0
    %1002 = vmatpush1.bf16.msra.mxu0 %v730
    %1003 = vmatprep.subr.bf16.mxu0 0
    %1004 = vmatpush1.bf16.msra.mxu0 %v733
    %1005 = vmatprep.subr.bf16.mxu0 0
    %1006 = vmatpush1.bf16.msra.mxu0 %v736
    %1007 = vmatprep.subr.bf16.mxu0 0
    %1008 = vmatpush1.bf16.msra.mxu0 %v739
    %1009 = vmatprep.subr.bf16.mxu0 0
    %1010 = vmatpush1.bf16.msra.mxu0 %v742
    %1011 = vmatprep.subr.bf16.mxu0 0
    %1012 = vmatpush1.bf16.msra.mxu0 %v745
    %1013 = vmatprep.subr.bf16.mxu0 0
    %1014 = vmatpush1.bf16.msra.mxu0 %v748
    %1015 = vmatprep.subr.bf16.mxu0 0
    %1016 = vmatpush1.bf16.msra.mxu0 %v751
    %1017 = vmatprep.subr.bf16.mxu0 0
    %1018 = vmatpush1.bf16.msra.mxu0 %v754
    %1019 = vmatprep.subr.bf16.mxu0 0
    %1020 = vmatpush1.bf16.msra.mxu0 %v757
    %1021 = vmatprep.subr.bf16.mxu0 0
    %1022 = vmatpush1.bf16.msra.mxu0 %v760
    %1023 = vmatprep.mubr.bf16.mxu0 %v245
    %1024 = vmatmul.mubr.bf16.gmra.mrb[0].mxu0 %v244
    %v1025 = vpop.f32.mrb[0].mxu0
    %v1026 = vadd.f32 %v389, %v1025
    %v1027 = vpop.f32.mrb[0].mxu0
    %v1028 = vpop.f32.mrb[0].mxu0
    %v1029 = vadd.f32 %v389, %v1028
    %v1030 = vpop.f32.mrb[0].mxu0
    %1031 = vdwg.mxu0
    %1032 = vmatprep.subr.bf16.mxu0 0
    %1033 = vmatpush1.bf16.msra.mxu0 %v763
    %1034 = vmatprep.subr.bf16.mxu0 0
    %1035 = vmatpush1.bf16.msra.mxu0 %v766
    %1036 = vmatprep.subr.bf16.mxu0 0
    %1037 = vmatpush1.bf16.msra.mxu0 %v769
    %1038 = vmatprep.subr.bf16.mxu0 0
    %1039 = vmatpush1.bf16.msra.mxu0 %v772
    %1040 = vmatprep.subr.bf16.mxu0 0
    %1041 = vmatpush1.bf16.msra.mxu0 %v775
    %1042 = vmatprep.subr.bf16.mxu0 0
    %1043 = vmatpush1.bf16.msra.mxu0 %v778
    %1044 = vmatprep.subr.bf16.mxu0 0
    %1045 = vmatpush1.bf16.msra.mxu0 %v781
    %1046 = vmatprep.subr.bf16.mxu0 0
    %1047 = vmatpush1.bf16.msra.mxu0 %v784
    %1048 = vmatprep.subr.bf16.mxu0 0
    %1049 = vmatpush1.bf16.msra.mxu0 %v787
    %1050 = vmatprep.subr.bf16.mxu0 0
    %1051 = vmatpush1.bf16.msra.mxu0 %v790
    %1052 = vmatprep.subr.bf16.mxu0 0
    %1053 = vmatpush1.bf16.msra.mxu0 %v793
    %1054 = vmatprep.subr.bf16.mxu0 0
    %1055 = vmatpush1.bf16.msra.mxu0 %v796
    %1056 = vmatprep.subr.bf16.mxu0 0
    %1057 = vmatpush1.bf16.msra.mxu0 %v799
    %1058 = vmatprep.subr.bf16.mxu0 0
    %1059 = vmatpush1.bf16.msra.mxu0 %v802
    %1060 = vmatprep.subr.bf16.mxu0 0
    %1061 = vmatpush1.bf16.msra.mxu0 %v805
    %1062 = vmatprep.subr.bf16.mxu0 0
    %1063 = vmatpush1.bf16.msra.mxu0 %v808
    %1064 = vmatprep.mubr.bf16.mxu0 %v247
    %1065 = vmatmul.mubr.bf16.gmra.mrb[0].mxu0 %v246
    %v1066 = vpop.f32.mrb[0].mxu0
    %v1067 = vadd.f32 %v1026, %v1066
    %v1068 = vpop.f32.mrb[0].mxu0
    %v1069 = vpop.f32.mrb[0].mxu0
    %v1070 = vadd.f32 %v1029, %v1069
    %v1071 = vpop.f32.mrb[0].mxu0
    %1072 = vdwg.mxu0
    %v1073 = vmax.f32 %v983, 0.0
    %v1074 = vmax.f32 %v985, 0.0
    %v1075 = vmax.f32 %v1067, 0.0
    %v1076 = vmax.f32 %v987, 0.0
    %v1077 = vmax.f32 %v989, 0.0
    %v1078 = vmax.f32 %v1070, 0.0
    %v1079 = vpack.c.bf16 %v1076, %v1073
    %v1080 = vpack.c.bf16 %v1077, %v1074
    %v1081 = vpack.c.bf16 %v1078, %v1075
    %v1082 = vld [vmem:[#allocation6] sm:$0xf]
    %v1083 = vld [vmem:[#allocation6 + $0x4] sm:$0xf]
    %v1084 = vld [vmem:[#allocation6 + $0x8] sm:$0xf]
    %v1085 = vld [vmem:[#allocation6 + $0xc] sm:$0xf]
    %v1086 = vld [vmem:[#allocation6 + $0x10] sm:$0xf]
    %v1087 = vld [vmem:[#allocation6 + $0x14] sm:$0xf]
    %v1088 = vld [vmem:[#allocation6 + $0x18] sm:$0xf]
    %v1089 = vld [vmem:[#allocation6 + $0x1c] sm:$0xf]
    %v1090 = vld [vmem:[#allocation6 + $0x20] sm:$0xf]
    %v1091 = vld [vmem:[#allocation6 + $0x24] sm:$0xf]
    %v1092 = vld [vmem:[#allocation6 + $0x28] sm:$0xf]
    %v1093 = vld [vmem:[#allocation6 + $0x2c] sm:$0xf]
    %v1094 = vld [vmem:[#allocation6 + $0x30] sm:$0xf]
    %v1095 = vld [vmem:[#allocation6 + $0x34] sm:$0xf]
    %v1096 = vld [vmem:[#allocation6 + $0x38] sm:$0xf]
    %v1097 = vld [vmem:[#allocation6 + $0x3c] sm:$0xf]
    %v1098 = vld [vmem:[#allocation6 + $0x40] sm:$0xf]
    %v1099 = vld [vmem:[#allocation6 + $0x44] sm:$0xf]
    %v1100 = vld [vmem:[#allocation6 + $0x48] sm:$0xf]
    %v1101 = vld [vmem:[#allocation6 + $0x4c] sm:$0xf]
    %v1102 = vld [vmem:[#allocation6 + $0x50] sm:$0xf]
    %v1103 = vld [vmem:[#allocation6 + $0x54] sm:$0xf]
    %v1104 = vld [vmem:[#allocation6 + $0x58] sm:$0xf]
    %v1105 = vld [vmem:[#allocation6 + $0x5c] sm:$0xf]
    %v1106 = vld [vmem:[#allocation6 + $0x60] sm:$0xf]
    %v1107 = vld [vmem:[#allocation6 + $0x64] sm:$0xf]
    %v1108 = vld [vmem:[#allocation6 + $0x68] sm:$0xf]
    %v1109 = vld [vmem:[#allocation6 + $0x6c] sm:$0xf]
    %v1110 = vld [vmem:[#allocation6 + $0x70] sm:$0xf]
    %v1111 = vld [vmem:[#allocation6 + $0x74] sm:$0xf]
    %v1112 = vld [vmem:[#allocation6 + $0x78] sm:$0xf]
    %v1113 = vld [vmem:[#allocation6 + $0x7c] sm:$0xf]
    %v1114 = vld [vmem:[#allocation6 + $0x80] sm:$0xf]
    %v1115 = vld [vmem:[#allocation6 + $0x84] sm:$0xf]
    %v1116 = vld [vmem:[#allocation6 + $0x88] sm:$0xf]
    %v1117 = vld [vmem:[#allocation6 + $0x8c] sm:$0xf]
    %v1118 = vld [vmem:[#allocation6 + $0x90] sm:$0xf]
    %v1119 = vld [vmem:[#allocation6 + $0x94] sm:$0xf]
    %v1120 = vld [vmem:[#allocation6 + $0x98] sm:$0xf]
    %v1121 = vld [vmem:[#allocation6 + $0x9c] sm:$0xf]
    %v1122 = vld [vmem:[#allocation6 + $0xa0] sm:$0xf]
    %v1123 = vld [vmem:[#allocation6 + $0xa4] sm:$0xf]
    %v1124 = vld [vmem:[#allocation6 + $0xa8] sm:$0xf]
    %v1125 = vld [vmem:[#allocation6 + $0xac] sm:$0xf]
    %v1126 = vld [vmem:[#allocation6 + $0xb0] sm:$0xf]
    %v1127 = vld [vmem:[#allocation6 + $0xb4] sm:$0xf]
    %v1128 = vld [vmem:[#allocation6 + $0xb8] sm:$0xf]
    %v1129 = vld [vmem:[#allocation6 + $0xbc] sm:$0xf]
    %v1130 = vld [vmem:[%s6] sm:$0x1]
    %v1132 = vlaneseq
    %v1133 = vshrl.u32 %v1132, 7
    %v1134 = vsub.s32 0, %v1133
    %v1135 = vrot.slane %v1130, %v1134
    %v1185 = vunpack.c.l.b16 %v1082
    %v1186 = vunpack.c.l.b16 %v1083
    %v1187 = vunpack.c.l.b16 %v1084
    %v1188 = vunpack.c.l.b16 %v1085
    %v1189 = vunpack.c.l.b16 %v1086
    %v1190 = vunpack.c.l.b16 %v1087
    %v1191 = vunpack.c.l.b16 %v1088
    %v1192 = vunpack.c.l.b16 %v1089
    %v1193 = vunpack.c.l.b16 %v1090
    %v1194 = vunpack.c.l.b16 %v1091
    %v1195 = vunpack.c.l.b16 %v1092
    %v1196 = vunpack.c.l.b16 %v1093
    %v1197 = vunpack.c.l.b16 %v1094
    %v1198 = vunpack.c.l.b16 %v1095
    %v1199 = vunpack.c.l.b16 %v1096
    %v1200 = vunpack.c.l.b16 %v1097
    %v1201 = vunpack.c.l.b16 %v1098
    %v1202 = vunpack.c.l.b16 %v1099
    %v1203 = vunpack.c.l.b16 %v1100
    %v1204 = vunpack.c.l.b16 %v1101
    %v1205 = vunpack.c.l.b16 %v1102
    %v1206 = vunpack.c.l.b16 %v1103
    %v1207 = vunpack.c.l.b16 %v1104
    %v1208 = vunpack.c.l.b16 %v1105
    %v1209 = vunpack.c.l.b16 %v1106
    %v1210 = vunpack.c.l.b16 %v1107
    %v1211 = vunpack.c.l.b16 %v1108
    %v1212 = vunpack.c.l.b16 %v1109
    %v1213 = vunpack.c.l.b16 %v1110
    %v1214 = vunpack.c.l.b16 %v1111
    %v1215 = vunpack.c.l.b16 %v1112
    %v1216 = vunpack.c.l.b16 %v1113
    %v1217 = vunpack.c.l.b16 %v1114
    %v1218 = vunpack.c.l.b16 %v1115
    %v1219 = vunpack.c.l.b16 %v1116
    %v1220 = vunpack.c.l.b16 %v1117
    %v1221 = vunpack.c.l.b16 %v1118
    %v1222 = vunpack.c.l.b16 %v1119
    %v1223 = vunpack.c.l.b16 %v1120
    %v1224 = vunpack.c.l.b16 %v1121
    %v1225 = vunpack.c.l.b16 %v1122
    %v1226 = vunpack.c.l.b16 %v1123
    %v1227 = vunpack.c.l.b16 %v1124
    %v1228 = vunpack.c.l.b16 %v1125
    %v1229 = vunpack.c.l.b16 %v1126
    %v1230 = vunpack.c.l.b16 %v1127
    %v1231 = vunpack.c.l.b16 %v1128
    %v1232 = vunpack.c.l.b16 %v1129
    %v1233 = vpack.c.b16 %v1186, %v1185
    %v1234 = vpack.c.b16 %v1188, %v1187
    %v1235 = vpack.c.b16 %v1190, %v1189
    %v1236 = vpack.c.b16 %v1192, %v1191
    %v1237 = vpack.c.b16 %v1194, %v1193
    %v1238 = vpack.c.b16 %v1196, %v1195
    %v1239 = vpack.c.b16 %v1198, %v1197
    %v1240 = vpack.c.b16 %v1200, %v1199
    %v1241 = vpack.c.b16 %v1202, %v1201
    %v1242 = vpack.c.b16 %v1204, %v1203
    %v1243 = vpack.c.b16 %v1206, %v1205
    %v1244 = vpack.c.b16 %v1208, %v1207
    %v1245 = vpack.c.b16 %v1210, %v1209
    %v1246 = vpack.c.b16 %v1212, %v1211
    %v1247 = vpack.c.b16 %v1214, %v1213
    %v1248 = vpack.c.b16 %v1216, %v1215
    %v1249 = vpack.c.b16 %v1218, %v1217
    %v1250 = vpack.c.b16 %v1220, %v1219
    %v1251 = vpack.c.b16 %v1222, %v1221
    %v1252 = vpack.c.b16 %v1224, %v1223
    %v1253 = vpack.c.b16 %v1226, %v1225
    %v1254 = vpack.c.b16 %v1228, %v1227
    %v1255 = vpack.c.b16 %v1230, %v1229
    %v1256 = vpack.c.b16 %v1232, %v1231
    %1281 = vmatprep.subr.bf16.mxu0 0
    %1282 = vmatpush1.bf16.msra.mxu0 %v1233
    %1283 = vmatprep.subr.bf16.mxu0 0
    %1284 = vmatpush1.bf16.msra.mxu0 %v1234
    %1285 = vmatprep.subr.bf16.mxu0 0
    %1286 = vmatpush1.bf16.msra.mxu0 %v1235
    %1287 = vmatprep.subr.bf16.mxu0 0
    %1288 = vmatpush1.bf16.msra.mxu0 %v1236
    %1289 = vmatprep.subr.bf16.mxu0 0
    %1290 = vmatpush1.bf16.msra.mxu0 %v1237
    %1291 = vmatprep.subr.bf16.mxu0 0
    %1292 = vmatpush1.bf16.msra.mxu0 %v1238
    %1293 = vmatprep.subr.bf16.mxu0 0
    %1294 = vmatpush1.bf16.msra.mxu0 %v1239
    %1295 = vmatprep.subr.bf16.mxu0 0
    %1296 = vmatpush1.bf16.msra.mxu0 %v1240
    %1297 = vmatprep.subr.bf16.mxu0 0
    %1298 = vmatpush1.bf16.msra.mxu0 %v1241
    %1299 = vmatprep.subr.bf16.mxu0 0
    %1300 = vmatpush1.bf16.msra.mxu0 %v1242
    %1301 = vmatprep.subr.bf16.mxu0 0
    %1302 = vmatpush1.bf16.msra.mxu0 %v1243
    %1303 = vmatprep.subr.bf16.mxu0 0
    %1304 = vmatpush1.bf16.msra.mxu0 %v1244
    %1305 = vmatprep.subr.bf16.mxu0 0
    %1306 = vmatpush1.bf16.msra.mxu0 %v1245
    %1307 = vmatprep.subr.bf16.mxu0 0
    %1308 = vmatpush1.bf16.msra.mxu0 %v1246
    %1309 = vmatprep.subr.bf16.mxu0 0
    %1310 = vmatpush1.bf16.msra.mxu0 %v1247
    %1311 = vmatprep.subr.bf16.mxu0 0
    %1312 = vmatpush1.bf16.msra.mxu0 %v1248
    %1313 = vmatprep.mubr.bf16.mxu0 %v1080
    %1314 = vmatmul.mubr.bf16.gmra.mrb[0].mxu0 %v1079
    %v1315 = vpop.f32.mrb[0].mxu0
    %v1316 = vadd.f32 %v1135, %v1315
    %v1317 = vpop.f32.mrb[0].mxu0
    %v1318 = vpop.f32.mrb[0].mxu0
    %v1319 = vadd.f32 %v1135, %v1318
    %v1320 = vpop.f32.mrb[0].mxu0
    %1321 = vdwg.mxu0
    %1322 = vmatprep.subr.bf16.mxu0 0
    %1323 = vmatpush1.bf16.msra.mxu0 %v1249
    %1324 = vmatprep.subr.bf16.mxu0 0
    %1325 = vmatpush1.bf16.msra.mxu0 %v1250
    %1326 = vmatprep.subr.bf16.mxu0 0
    %1327 = vmatpush1.bf16.msra.mxu0 %v1251
    %1328 = vmatprep.subr.bf16.mxu0 0
    %1329 = vmatpush1.bf16.msra.mxu0 %v1252
    %1330 = vmatprep.subr.bf16.mxu0 0
    %1331 = vmatpush1.bf16.msra.mxu0 %v1253
    %1332 = vmatprep.subr.bf16.mxu0 0
    %1333 = vmatpush1.bf16.msra.mxu0 %v1254
    %1334 = vmatprep.subr.bf16.mxu0 0
    %1335 = vmatpush1.bf16.msra.mxu0 %v1255
    %1336 = vmatprep.subr.bf16.mxu0 0
    %1337 = vmatpush1.bf16.msra.mxu0 %v1256
    %1338 = vmatprep.subr.bf16.mxu0 0
    %1339 = vmatpush1.bf16.msra.mxu0 0
    %1340 = vmatprep.subr.bf16.mxu0 0
    %1341 = vmatpush1.bf16.msra.mxu0 0
    %1342 = vmatprep.subr.bf16.mxu0 0
    %1343 = vmatpush1.bf16.msra.mxu0 0
    %1344 = vmatprep.subr.bf16.mxu0 0
    %1345 = vmatpush1.bf16.msra.mxu0 0
    %1346 = vmatprep.subr.bf16.mxu0 0
    %1347 = vmatpush1.bf16.msra.mxu0 0
    %1348 = vmatprep.subr.bf16.mxu0 0
    %1349 = vmatpush1.bf16.msra.mxu0 0
    %1350 = vmatprep.subr.bf16.mxu0 0
    %1351 = vmatpush1.bf16.msra.mxu0 0
    %1352 = vmatprep.subr.bf16.mxu0 0
    %1353 = vmatpush1.bf16.msra.mxu0 0
    %1354 = vmatprep.mubr.bf16.mxu0 0
    %1355 = vmatmul.mubr.bf16.gmra.mrb[0].mxu0 %v1081
    %v1356 = vpop.f32.mrb[0].mxu0
    %v1357 = vadd.f32 %v1316, %v1356
    %v1358 = vpop.f32.mrb[0].mxu0
    %v1359 = vpop.f32.mrb[0].mxu0
    %v1360 = vadd.f32 %v1319, %v1359
    %v1361 = vpop.f32.mrb[0].mxu0
    %1362 = vdwg.mxu0
    %v1363 = vtanh.pop %v1357
    %v1364 = vtanh.pop %v1360
    %1365 = vst [vmem:[%s7] sm:$0xff] %v1363
    %1366 = vst [vmem:[%s7 + $0x8] sm:$0xff] %v1364
    // Predicated region
    $region42: #{actor_forward.1} parent=1 // pred_check
      _
    $region43: #{actor_forward.1} parent=1 // pred_check_branch
      %1368 = sbr.rel (0) target = $region45
    $region44: #{actor_forward.1} parent=1 // pred_region
      _
    $region45: #{actor_forward.1} parent=1 // pred_fallthru
      _
    // Predicated region
    $region46: #{actor_forward.1} parent=1 // pred_check
      _
    $region47: #{actor_forward.1} parent=1 // pred_check_branch
      %1370 = sbr.rel (0) target = $region49
    $region48: #{actor_forward.1} parent=1 // pred_region
      _
    $region49: #{actor_forward.1} parent=1 // pred_fallthru
      _
    %1371 = vsyncpa [#allocation3], 1
    %1372 = vsyncpa [#allocation5], 1

</llo_original>
